<compile_context>
chip_gen: v7x
topology: tpu7x:2x2x1
jax: 0.10.0
libtpu: 0.0.40
codegen_flags: <defaults>
</compile_context>

<pallas_src>
import functools

import jax
import jax.numpy as jnp
from jax.experimental import pallas as pl
from jax.experimental.pallas import tpu as pltpu


def _round_up(v, m):
    return ((v + m - 1) // m) * m


def _nbytes(a):
    return a.size * a.dtype.itemsize


# ----------------------------- Pallas kernel -------------------------------

def _res_layer_kernel(x_ref, w1c_ref, b1_ref, w2_ref, b2_ref, o_ref, *,
                      act, hid_p, identity_res, compute_dtype):
    """Fused ResLayer tile: y = act(act(x@W1+b1)@W2+b2) + residual.

    w1c_ref holds [W1 | Wres] (projection path) or just W1 (identity path), so
    a single MXU matmul over x serves both fc1 and the residual projection.
    x arrives unpadded (row_tile, in_dim); weight column dims are 128-padded so
    every slice below is lane-tile aligned and the output store is lane-dense.
    """
    x = x_ref[...]                                        # (tile, in_dim)
    xc = x.astype(compute_dtype)
    xw = jnp.dot(xc, w1c_ref[...],                        # (tile, hid_p [+ out_p])
                 preferred_element_type=jnp.float32)
    h = act(xw[:, :hid_p] + b1_ref[...])                  # f32 elementwise
    y = jnp.dot(h.astype(compute_dtype), w2_ref[...],
                preferred_element_type=jnp.float32) + b2_ref[...]
    y = act(y)                                            # (tile, out_p), f32
    if identity_res:
        res = x.astype(jnp.float32)                       # in_dim == out_dim
        lane_pad = o_ref.shape[-1] - res.shape[-1]
        if lane_pad:
            res = jnp.concatenate(
                [res, jnp.zeros((res.shape[0], lane_pad), jnp.float32)],
                axis=-1)
        y = y + res
    else:
        y = y + xw[:, hid_p:]                             # x @ Wres (fused above)
    o_ref[...] = y.astype(o_ref.dtype)


# --------------------- One-time parameter preparation -----------------------

def prepare_res_layer_params(params, *, compute_dtype=jnp.bfloat16):
    """Transpose to (in,out), zero-pad output feature dims to multiples of 128,
    fuse [W1 | Wres], and cast matmul operands to compute_dtype. Done ONCE."""
    hidden_dim, in_dim = params["fc1_w"].shape
    out_dim = params["fc2_w"].shape[0]
    hid_p, out_p = _round_up(hidden_dim, 128), _round_up(out_dim, 128)

    def pad(a, rows, cols, dtype):
        z = jnp.zeros((rows, cols), dtype)
        return z.at[:a.shape[0], :a.shape[1]].set(a.astype(dtype))

    # K dim (in_dim) stays unpadded: it only feeds the MXU contraction and
    # matches the unpadded x tile streamed from HBM.
    w1 = pad(params["fc1_w"].T, in_dim, hid_p, compute_dtype)        # (in, hid_p)
    identity = "res_w" not in params
    if identity:
        w1c = w1
    else:
        wres = pad(params["res_w"].T, in_dim, out_p, compute_dtype)  # (in, out_p)
        w1c = jnp.concatenate([w1, wres], axis=1)                    # (in, hid_p+out_p)
    w2 = pad(params["fc2_w"].T, hid_p, out_p, compute_dtype)         # (hid_p, out_p)
    b1 = pad(params["fc1_b"].reshape(1, -1), 1, hid_p, jnp.float32)
    b2 = pad(params["fc2_b"].reshape(1, -1), 1, out_p, jnp.float32)

    return dict(w1c=w1c, b1=b1, w2=w2, b2=b2,
                in_dim=in_dim, hidden_dim=hidden_dim, out_dim=out_dim,
                hid_p=hid_p, out_p=out_p,
                identity=identity, compute_dtype=compute_dtype)


# ------------------------------- Wrapper ------------------------------------

def res_layer_forward(x, prep, *, activation=jax.nn.relu, row_tile=None,
                      out_dtype=None, single_buffer_weights=True):
    """x: [N, in_dim].  prep: output of prepare_res_layer_params."""
    N, in_dim = x.shape
    assert in_dim == prep["in_dim"], "feature dim mismatch"
    hid_p, out_p = prep["hid_p"], prep["out_p"]
    w1c, b1, w2, b2 = prep["w1c"], prep["b1"], prep["w2"], prep["b2"]
    out_dtype = x.dtype if out_dtype is None else jnp.dtype(out_dtype)
    cdt_size = jnp.dtype(prep["compute_dtype"]).itemsize

    # ---- row-tile heuristic ----------------------------------------------
    if row_tile is None:
        # Cap so per-tile f32 intermediates (xw + h + y) stay around <= 8 MiB.
        live_cols = w1c.shape[1] + hid_p + out_p
        cap = max(64, (8 << 20) // (4 * live_cols))
        cap = min(512, max(16, (cap // 16) * 16))
        # >= 4 grid steps when N allows: 2 per TensorCore on v7x, and enough
        # steps on 1-TC chips to hide prologue/epilogue DMA behind compute.
        want = _round_up(pl.cdiv(N, 4), 16)
        row_tile = max(16, min(cap, want))
    row_tile = _round_up(row_tile, 16)        # bf16 packs 16 rows / vreg group
    grid_len = pl.cdiv(N, row_tile)           # ragged last block is fine

    kernel = functools.partial(
        _res_layer_kernel, act=activation, hid_p=hid_p,
        identity_res=prep["identity"], compute_dtype=prep["compute_dtype"])

    # x block: last dim == full array dim (legal, no lane padding of x needed).
    x_spec = pl.BlockSpec((row_tile, in_dim), lambda i: (i, 0))
    o_spec = pl.BlockSpec((row_tile, out_p), lambda i: (i, 0))

    # ---- explicit VMEM budget ----------------------------------------------
    wbuf = 1 if single_buffer_weights else 2
    resident_w = wbuf * (_nbytes(w1c) + _nbytes(w2) + _nbytes(b1) + _nbytes(b2))
    io_tiles = 2 * row_tile * (in_dim * x.dtype.itemsize
                               + out_p * out_dtype.itemsize)
    inter = row_tile * 4 * (w1c.shape[1] + hid_p + out_p)          # xw, h, y f32
    inter += row_tile * (in_dim + hid_p) * cdt_size                # bf16 casts
    vmem_limit = int(1.3 * (resident_w + io_tiles + inter)) + (2 << 20)
    vmem_limit = min(64 << 20, max(32 << 20, vmem_limit))          # legal on all gens

    # ---- cost estimate ------------------------------------------------------
    flops = 2 * N * (in_dim * w1c.shape[1] + hid_p * out_p)
    transcendentals = 0 if activation is jax.nn.relu else N * (hid_p + out_p)
    bytes_accessed = int(N * in_dim * x.dtype.itemsize
                         + _nbytes(w1c) + _nbytes(b1) + _nbytes(w2) + _nbytes(b2)
                         + N * out_p * out_dtype.itemsize)
    cost = pl.CostEstimate(flops=int(flops), transcendentals=int(transcendentals),
                           bytes_accessed=bytes_accessed)

    def _weight_spec(a, single_buffer):
        if single_buffer:
            return pl.BlockSpec(a.shape, lambda i: (0, 0),
                                pipeline_mode=pl.Buffered(1))
        return pl.BlockSpec(a.shape, lambda i: (0, 0))

    def _run(single_buffer):
        in_specs = [x_spec] + [_weight_spec(a, single_buffer)
                               for a in (w1c, b1, w2, b2)]
        return pl.pallas_call(
            kernel,
            out_shape=jax.ShapeDtypeStruct((N, out_p), out_dtype),
            grid_spec=pltpu.PrefetchScalarGridSpec(
                num_scalar_prefetch=0,
                grid=(grid_len,),
                in_specs=in_specs,
                out_specs=o_spec,
            ),
            compiler_params=pltpu.CompilerParams(
                dimension_semantics=("parallel",),
                vmem_limit_bytes=vmem_limit),
            cost_estimate=cost,
        )(x, w1c, b1, w2, b2)

    if single_buffer_weights:
        try:
            out = _run(True)
        except Exception:
            # Fallback if this jax build rejects pipeline_mode=pl.Buffered(1).
            out = _run(False)
    else:
        out = _run(False)

    return out[:, :prep["out_dim"]]


# -------------------------- Parameter initialization ------------------------

def glorot_orthogonal(key, out_dim, in_dim, scale=2.0):
    """Stand-in for GlorotOrthogonal: orthogonal matrix rescaled so that
    Var(W) ~= scale / (fan_in + fan_out).  Returns torch layout (out, in)."""
    a = jax.random.normal(key, (out_dim, in_dim), dtype=jnp.float32)
    q, _ = jnp.linalg.qr(a.T if out_dim < in_dim else a)
    w = q.T if out_dim < in_dim else q
    w = w[:out_dim, :in_dim]
    var = jnp.var(w) + 1e-12
    w = w * jnp.sqrt(scale / ((in_dim + out_dim) * var))
    return w.astype(jnp.float32)


def init_res_layer_params(key, in_dim, hidden_dim, out_dim):
    k1, k2, k3 = jax.random.split(key, 3)
    params = {
        "fc1_w": glorot_orthogonal(k1, hidden_dim, in_dim),
        "fc1_b": jnp.zeros((hidden_dim,), jnp.float32),
        "fc2_w": glorot_orthogonal(k2, out_dim, hidden_dim),
        "fc2_b": jnp.zeros((out_dim,), jnp.float32),
    }
    if in_dim != out_dim:
        params["res_w"] = glorot_orthogonal(k3, out_dim, in_dim)
    return params


# ------------------------------ Reference ----------------------------------

def res_layer_ref(x, params, activation=jax.nn.relu):
    out = activation(x @ params["fc1_w"].T + params["fc1_b"])
    out = activation(out @ params["fc2_w"].T + params["fc2_b"])
    if "res_w" in params:
        out = out + x @ params["res_w"].T
    else:
        out = out + x
    return out


# --------------------------------- Main ------------------------------------

if __name__ == "__main__":
    key = jax.random.PRNGKey(0)
    kx1, kx2, kx3, kp1, kp2, kp3 = jax.random.split(key, 6)

    # Case 1: in_dim != out_dim (projection residual), bf16 MXU operands.
    N1, in1, hid1, out1 = 128, 32, 64, 48
    x1 = jax.random.normal(kx1, (N1, in1), dtype=jnp.float32)
    p1 = init_res_layer_params(kp1, in1, hid1, out1)
    prep1 = prepare_res_layer_params(p1, compute_dtype=jnp.bfloat16)
    y1 = jax.block_until_ready(res_layer_forward(x1, prep1))
    assert y1.shape == (N1, out1)
    assert jnp.allclose(y1, res_layer_ref(x1, p1), atol=3e-2, rtol=3e-2), \
        "proj-path mismatch"

    # Case 2: in_dim == out_dim (identity residual), ragged N, f32 operands
    # (exercises the masked last block + exact identity residual).
    N2, in2, hid2, out2 = 100, 32, 64, 32
    x2 = jax.random.normal(kx2, (N2, in2), dtype=jnp.float32)
    p2 = init_res_layer_params(kp2, in2, hid2, out2)
    prep2 = prepare_res_layer_params(p2, compute_dtype=jnp.float32)
    y2 = jax.block_until_ready(res_layer_forward(x2, prep2))
    assert y2.shape == (N2, out2)
    assert jnp.allclose(y2, res_layer_ref(x2, p2), atol=1e-5, rtol=1e-5), \
        "identity-path mismatch"

    # Case 3: non-relu activation (tanh -> EUP, transcendental cost estimate).
    N3, in3, hid3, out3 = 96, 48, 96, 64
    x3 = jax.random.normal(kx3, (N3, in3), dtype=jnp.float32)
    p3 = init_res_layer_params(kp3, in3, hid3, out3)
    prep3 = prepare_res_layer_params(p3, compute_dtype=jnp.bfloat16)
    y3 = jax.block_until_ready(
        res_layer_forward(x3, prep3, activation=jnp.tanh))
    assert y3.shape == (N3, out3)
    assert jnp.allclose(y3, res_layer_ref(x3, p3, activation=jnp.tanh),
                        atol=3e-2, rtol=3e-2), "tanh-path mismatch"

    print("KERNEL_OK")
</pallas_src>

<mosaic_0001>
module attributes {stable_mosaic.version = 11 : i64} {
  func.func @_res_layer_kernel(%arg0: i32, %arg1: memref<32x32xf32, #tpu.memory_space<vmem>>, %arg2: memref<32x256xbf16, #tpu.memory_space<vmem>>, %arg3: memref<1x128xf32, #tpu.memory_space<vmem>>, %arg4: memref<128x128xbf16, #tpu.memory_space<vmem>>, %arg5: memref<1x128xf32, #tpu.memory_space<vmem>>, %arg6: memref<32x128xf32, #tpu.memory_space<vmem>>) attributes {dimension_semantics = [#tpu.dimension_semantics<parallel>], iteration_bounds = array<i64: 4>, scalar_prefetch = 0 : i64, scratch_operands = 0 : i64, tpu.core_type = #tpu.core_type<tc>, window_params = [{transform_indices = @transform_0, window_bounds = array<i64: 32, 32>}, {pipeline_mode = #tpu.pipeline_mode<synchronous>, transform_indices = @transform_1, window_bounds = array<i64: 32, 256>}, {pipeline_mode = #tpu.pipeline_mode<synchronous>, transform_indices = @transform_2, window_bounds = array<i64: 1, 128>}, {pipeline_mode = #tpu.pipeline_mode<synchronous>, transform_indices = @transform_3, window_bounds = array<i64: 128, 128>}, {pipeline_mode = #tpu.pipeline_mode<synchronous>, transform_indices = @transform_4, window_bounds = array<i64: 1, 128>}, {transform_indices = @transform_5, window_bounds = array<i64: 32, 128>}]} {
    %c0 = arith.constant 0 : index
    %c0_0 = arith.constant 0 : index
    %0 = vector.load %arg1[%c0, %c0_0] : memref<32x32xf32, #tpu.memory_space<vmem>>, vector<32x32xf32>
    %1 = arith.truncf %0 : vector<32x32xf32> to vector<32x32xbf16>
    %c0_1 = arith.constant 0 : index
    %c0_2 = arith.constant 0 : index
    %2 = vector.load %arg2[%c0_1, %c0_2] : memref<32x256xbf16, #tpu.memory_space<vmem>>, vector<32x256xbf16>
    %cst = arith.constant dense<0.000000e+00> : vector<32x256xf32>
    %3 = tpu.matmul %1, %2, %cst {dimension_numbers = #tpu.dot_dimension_numbers<[1], [0], [0], [1], [0, 0, 1, 1], [], []>} : vector<32x32xbf16>, vector<32x256xbf16>, vector<32x256xf32> -> vector<32x256xf32>
    %4 = vector.extract_strided_slice %3 {offsets = [0, 0], sizes = [32, 128], strides = [1, 1]} : vector<32x256xf32> to vector<32x128xf32>
    %c0_3 = arith.constant 0 : index
    %c0_4 = arith.constant 0 : index
    %5 = vector.load %arg3[%c0_3, %c0_4] : memref<1x128xf32, #tpu.memory_space<vmem>>, vector<1x128xf32>
    %6 = vector.broadcast %5 : vector<1x128xf32> to vector<32x128xf32>
    %7 = arith.addf %4, %6 : vector<32x128xf32>
    %cst_5 = arith.constant 0.000000e+00 : f32
    %8 = vector.broadcast %cst_5 : f32 to vector<32x128xf32>
    %9 = arith.maximumf %7, %8 : vector<32x128xf32>
    %10 = arith.truncf %9 : vector<32x128xf32> to vector<32x128xbf16>
    %c0_6 = arith.constant 0 : index
    %c0_7 = arith.constant 0 : index
    %11 = vector.load %arg4[%c0_6, %c0_7] : memref<128x128xbf16, #tpu.memory_space<vmem>>, vector<128x128xbf16>
    %cst_8 = arith.constant dense<0.000000e+00> : vector<32x128xf32>
    %12 = tpu.matmul %10, %11, %cst_8 {dimension_numbers = #tpu.dot_dimension_numbers<[1], [0], [0], [1], [0, 0, 1, 1], [], []>} : vector<32x128xbf16>, vector<128x128xbf16>, vector<32x128xf32> -> vector<32x128xf32>
    %c0_9 = arith.constant 0 : index
    %c0_10 = arith.constant 0 : index
    %13 = vector.load %arg5[%c0_9, %c0_10] : memref<1x128xf32, #tpu.memory_space<vmem>>, vector<1x128xf32>
    %14 = vector.broadcast %13 : vector<1x128xf32> to vector<32x128xf32>
    %15 = arith.addf %12, %14 : vector<32x128xf32>
    %cst_11 = arith.constant 0.000000e+00 : f32
    %16 = vector.broadcast %cst_11 : f32 to vector<32x128xf32>
    %17 = arith.maximumf %15, %16 : vector<32x128xf32>
    %18 = vector.extract_strided_slice %3 {offsets = [0, 128], sizes = [32, 128], strides = [1, 1]} : vector<32x256xf32> to vector<32x128xf32>
    %19 = arith.addf %17, %18 : vector<32x128xf32>
    %c0_12 = arith.constant 0 : index
    %c0_13 = arith.constant 0 : index
    %20 = vector.load %arg6[%c0_12, %c0_13] : memref<32x128xf32, #tpu.memory_space<vmem>>, vector<32x128xf32>
    tpu.vector_store %arg6[%c0_12, %c0_13], %19 {strides = array<i32>} : memref<32x128xf32, #tpu.memory_space<vmem>>, vector<32x128xf32>,
    return
  }
  func.func @transform_0(%arg0: i32) -> (i32, i32) {
    %c0_i32 = arith.constant 0 : i32
    %c0_i32_0 = arith.constant 0 : i32
    return %arg0, %c0_i32 : i32, i32
  }
  func.func @transform_1(%arg0: i32) -> (i32, i32) {
    %c0_i32 = arith.constant 0 : i32
    %c0_i32_0 = arith.constant 0 : i32
    %c0_i32_1 = arith.constant 0 : i32
    return %c0_i32, %c0_i32_0 : i32, i32
  }
  func.func @transform_2(%arg0: i32) -> (i32, i32) {
    %c0_i32 = arith.constant 0 : i32
    %c0_i32_0 = arith.constant 0 : i32
    %c0_i32_1 = arith.constant 0 : i32
    return %c0_i32, %c0_i32_0 : i32, i32
  }
  func.func @transform_3(%arg0: i32) -> (i32, i32) {
    %c0_i32 = arith.constant 0 : i32
    %c0_i32_0 = arith.constant 0 : i32
    %c0_i32_1 = arith.constant 0 : i32
    return %c0_i32, %c0_i32_0 : i32, i32
  }
  func.func @transform_4(%arg0: i32) -> (i32, i32) {
    %c0_i32 = arith.constant 0 : i32
    %c0_i32_0 = arith.constant 0 : i32
    %c0_i32_1 = arith.constant 0 : i32
    return %c0_i32, %c0_i32_0 : i32, i32
  }
  func.func @transform_5(%arg0: i32) -> (i32, i32) {
    %c0_i32 = arith.constant 0 : i32
    %c0_i32_0 = arith.constant 0 : i32
    return %arg0, %c0_i32 : i32, i32
  }
}

module attributes {stable_mosaic.version = 11 : i64} {
  func.func @_res_layer_kernel(%arg0: i32, %arg1: memref<32x32xf32, #tpu.memory_space<vmem>>, %arg2: memref<32x256xbf16, #tpu.memory_space<vmem>>, %arg3: memref<1x128xf32, #tpu.memory_space<vmem>>, %arg4: memref<128x128xbf16, #tpu.memory_space<vmem>>, %arg5: memref<1x128xf32, #tpu.memory_space<vmem>>, %arg6: memref<32x128xf32, #tpu.memory_space<vmem>>) attributes {dimension_semantics = [#tpu.dimension_semantics<parallel>], iteration_bounds = array<i64: 4>, scalar_prefetch = 0 : i64, scratch_operands = 0 : i64, tpu.core_type = #tpu.core_type<tc>, window_params = [{transform_indices = @transform_0, window_bounds = array<i64: 32, 32>}, {pipeline_mode = #tpu.pipeline_mode<synchronous>, transform_indices = @transform_1, window_bounds = array<i64: 32, 256>}, {pipeline_mode = #tpu.pipeline_mode<synchronous>, transform_indices = @transform_2, window_bounds = array<i64: 1, 128>}, {pipeline_mode = #tpu.pipeline_mode<synchronous>, transform_indices = @transform_3, window_bounds = array<i64: 128, 128>}, {pipeline_mode = #tpu.pipeline_mode<synchronous>, transform_indices = @transform_4, window_bounds = array<i64: 1, 128>}, {transform_indices = @transform_5, window_bounds = array<i64: 32, 128>}]} {
    %c0 = arith.constant 0 : index
    %c0_0 = arith.constant 0 : index
    %0 = vector.load %arg1[%c0, %c0_0] : memref<32x32xf32, #tpu.memory_space<vmem>>, vector<32x32xf32>
    %1 = arith.truncf %0 : vector<32x32xf32> to vector<32x32xbf16>
    %c0_1 = arith.constant 0 : index
    %c0_2 = arith.constant 0 : index
    %2 = vector.load %arg2[%c0_1, %c0_2] : memref<32x256xbf16, #tpu.memory_space<vmem>>, vector<32x256xbf16>
    %cst = arith.constant dense<0.000000e+00> : vector<32x256xf32>
    %3 = tpu.matmul %1, %2, %cst {dimension_numbers = #tpu.dot_dimension_numbers<[1], [0], [0], [1], [0, 0, 1, 1], [], []>} : vector<32x32xbf16>, vector<32x256xbf16>, vector<32x256xf32> -> vector<32x256xf32>
    %4 = vector.extract_strided_slice %3 {offsets = [0, 0], sizes = [32, 128], strides = [1, 1]} : vector<32x256xf32> to vector<32x128xf32>
    %c0_3 = arith.constant 0 : index
    %c0_4 = arith.constant 0 : index
    %5 = vector.load %arg3[%c0_3, %c0_4] : memref<1x128xf32, #tpu.memory_space<vmem>>, vector<1x128xf32>
    %6 = vector.broadcast %5 : vector<1x128xf32> to vector<32x128xf32>
    %7 = arith.addf %4, %6 : vector<32x128xf32>
    %cst_5 = arith.constant 0.000000e+00 : f32
    %8 = vector.broadcast %cst_5 : f32 to vector<32x128xf32>
    %9 = arith.maximumf %7, %8 : vector<32x128xf32>
    %10 = arith.truncf %9 : vector<32x128xf32> to vector<32x128xbf16>
    %c0_6 = arith.constant 0 : index
    %c0_7 = arith.constant 0 : index
    %11 = vector.load %arg4[%c0_6, %c0_7] : memref<128x128xbf16, #tpu.memory_space<vmem>>, vector<128x128xbf16>
    %cst_8 = arith.constant dense<0.000000e+00> : vector<32x128xf32>
    %12 = tpu.matmul %10, %11, %cst_8 {dimension_numbers = #tpu.dot_dimension_numbers<[1], [0], [0], [1], [0, 0, 1, 1], [], []>} : vector<32x128xbf16>, vector<128x128xbf16>, vector<32x128xf32> -> vector<32x128xf32>
    %c0_9 = arith.constant 0 : index
    %c0_10 = arith.constant 0 : index
    %13 = vector.load %arg5[%c0_9, %c0_10] : memref<1x128xf32, #tpu.memory_space<vmem>>, vector<1x128xf32>
    %14 = vector.broadcast %13 : vector<1x128xf32> to vector<32x128xf32>
    %15 = arith.addf %12, %14 : vector<32x128xf32>
    %cst_11 = arith.constant 0.000000e+00 : f32
    %16 = vector.broadcast %cst_11 : f32 to vector<32x128xf32>
    %17 = arith.maximumf %15, %16 : vector<32x128xf32>
    %18 = vector.extract_strided_slice %3 {offsets = [0, 128], sizes = [32, 128], strides = [1, 1]} : vector<32x256xf32> to vector<32x128xf32>
    %19 = arith.addf %17, %18 : vector<32x128xf32>
    %c0_12 = arith.constant 0 : index
    %c0_13 = arith.constant 0 : index
    %20 = vector.load %arg6[%c0_12, %c0_13] : memref<32x128xf32, #tpu.memory_space<vmem>>, vector<32x128xf32>
    tpu.vector_store %arg6[%c0_12, %c0_13], %19 {strides = array<i32>} : memref<32x128xf32, #tpu.memory_space<vmem>>, vector<32x128xf32>,
    return
  }
  func.func @transform_0(%arg0: i32) -> (i32, i32) {
    %c0_i32 = arith.constant 0 : i32
    %c0_i32_0 = arith.constant 0 : i32
    return %arg0, %c0_i32 : i32, i32
  }
  func.func @transform_1(%arg0: i32) -> (i32, i32) {
    %c0_i32 = arith.constant 0 : i32
    %c0_i32_0 = arith.constant 0 : i32
    %c0_i32_1 = arith.constant 0 : i32
    return %c0_i32, %c0_i32_0 : i32, i32
  }
  func.func @transform_2(%arg0: i32) -> (i32, i32) {
    %c0_i32 = arith.constant 0 : i32
    %c0_i32_0 = arith.constant 0 : i32
    %c0_i32_1 = arith.constant 0 : i32
    return %c0_i32, %c0_i32_0 : i32, i32
  }
  func.func @transform_3(%arg0: i32) -> (i32, i32) {
    %c0_i32 = arith.constant 0 : i32
    %c0_i32_0 = arith.constant 0 : i32
    %c0_i32_1 = arith.constant 0 : i32
    return %c0_i32, %c0_i32_0 : i32, i32
  }
  func.func @transform_4(%arg0: i32) -> (i32, i32) {
    %c0_i32 = arith.constant 0 : i32
    %c0_i32_0 = arith.constant 0 : i32
    %c0_i32_1 = arith.constant 0 : i32
    return %c0_i32, %c0_i32_0 : i32, i32
  }
  func.func @transform_5(%arg0: i32) -> (i32, i32) {
    %c0_i32 = arith.constant 0 : i32
    %c0_i32_0 = arith.constant 0 : i32
    return %arg0, %c0_i32 : i32, i32
  }
}

</mosaic_0001>

<llo_original>
// kernel: tpu_custom_call.1
$region0: #{tpu_custom_call.1}
  #allocation0 [shape = 'u32[]', space=smem, size = 0x4, offset = 0x4, fixed_abs, tag = 'smem constant byte address 0x4 - core index']
  #allocation1 [shape = 'u32[144,128]{1,0:T(1,128)}', space=vmem, size = 0x12000, scoped, tag = 'internal scratch']
  %s0 = inlined_call_operand.vmem [shape: f32[128,32], index: 0, kind: input, shape index: {}]
  %s1 = inlined_call_operand.vmem [shape: bf16[32,256], index: 1, kind: input, shape index: {}]
  %s2 = inlined_call_operand.vmem [shape: f32[1,128], index: 2, kind: input, shape index: {}]
  %s3 = inlined_call_operand.vmem [shape: bf16[128,128], index: 3, kind: input, shape index: {}]
  %s4 = inlined_call_operand.vmem [shape: f32[1,128], index: 4, kind: input, shape index: {}]
  %s5 = inlined_call_operand.hbm [shape: f32[128,128], index: 5, kind: output, shape index: {}]
  %s6 = sld [smem:[#allocation0]]
  $region53: #{tpu_custom_call.1} parent=0
    _
  %s8 = ssub.s32 1, %s6
  %s9 = scalar_select 0, %s8, %s6
  $region1: #{tpu_custom_call.1} parent=0
    #allocation2 [shape = 'u8[32768]{0}', space=vmem, size = 0x8000, scoped, tag = 'output window, operand 0']
    #allocation3 [shape = 's32[2]{0}', space=sflag, size = 0x8, scoped, tag = 'scoped memory for tpu_custom_call.1']
    %10 = vsyncpa [#allocation3], 0
    %s11 = scalar_lea.sflag [#allocation3], 1
    %12 = vsyncpa %s11, 0
    loop: start=0, step=1, limit=6
    $region2: #{tpu_custom_call.1} parent=1 // loop_pre_header
      _
    $region3: #{tpu_custom_call.1} parent=1 // loop_header
      %s14 = sphi 0, %s18
      %p15 = scmp.ge.s32.totalorder %s14, 6
      %s24 = sphi 0, %s26
      %s27 = sphi 0, %s24
      %s28 = sphi 0, %s27
      %s44 = sphi 0, %s28
      %s48 = sphi 0, %s48
      %s50 = sphi 0, %s48
      %s51 = sphi 0, %s50
      %s65 = sphi 0, %s51
      %s69 = sphi 0, %s69
      %s71 = sphi 0, %s69
      %s72 = sphi 0, %s71
      %s86 = sphi 0, %s72
      %s90 = sphi 0, %s90
      %s92 = sphi 0, %s90
      %s93 = sphi 0, %s92
      %s107 = sphi 0, %s93
      %s111 = sphi 0, %s111
      %s113 = sphi 0, %s111
      %s114 = sphi 0, %s113
      %s128 = sphi 0, %s114
      %s134 = sphi 0, %s136
      %s137 = sphi 0, %s134
      %s138 = sphi 0, %s137
      %s154 = sphi 0, %s138
    $region4: #{tpu_custom_call.1} parent=1 // loop_header_branch
      %17 = sbr.rel (%p15) target = $region8
    $region5: #{tpu_custom_call.1} parent=1 // loop_body
      %s19 = ssub.s32 %s14, 1
      %s20 = ssub.s32 %s14, 2
      %s21 = sadd.s32 %s14, 1
      %s22 = ssub.s32 %s14, %s21
      %p23 = scmp.eq.s32.totalorder %s22, 0
      %s25 = sadd.s32 %s24, 1
      %s26 = scalar_select %p23, %s24, %s25
      %p29 = pneg %p23
      %p30 = scmp.eq.s32.totalorder %s14, 3
      %p31 = por %p29, %p30
      %p32 = scmp.ne.s32.totalorder %s24, %s27
      %p33 = scmp.eq.s32.totalorder %s14, 0
      %p34 = por %p32, %p33
      %p35 = scmp.ne.s32.totalorder %s24, %s27
      %p36 = scmp.eq.s32.totalorder %s19, 3
      %p37 = por %p35, %p36
      %p38 = scmp.ne.s32.totalorder %s27, %s28
      %p39 = scmp.eq.s32.totalorder %s19, 0
      %p40 = por %p38, %p39
      %p41 = scmp.ne.s32.totalorder %s27, %s28
      %p42 = scmp.eq.s32.totalorder %s20, 3
      %p43 = por %p41, %p42
      %p45 = scmp.ne.s32.totalorder %s28, %s44
      %p46 = scmp.eq.s32.totalorder %s20, 0
      %p47 = por %p45, %p46
      %s49 = sadd.s32 %s48, 1
      %p52 = scmp.eq.s32.totalorder %s14, 3
      %p53 = scmp.ne.s32.totalorder %s48, %s50
      %p54 = scmp.eq.s32.totalorder %s14, 0
      %p55 = por %p53, %p54
      %p56 = scmp.ne.s32.totalorder %s48, %s50
      %p57 = scmp.eq.s32.totalorder %s19, 3
      %p58 = por %p56, %p57
      %p59 = scmp.ne.s32.totalorder %s50, %s51
      %p60 = scmp.eq.s32.totalorder %s19, 0
      %p61 = por %p59, %p60
      %p62 = scmp.ne.s32.totalorder %s50, %s51
      %p63 = scmp.eq.s32.totalorder %s20, 3
      %p64 = por %p62, %p63
      %p66 = scmp.ne.s32.totalorder %s51, %s65
      %p67 = scmp.eq.s32.totalorder %s20, 0
      %p68 = por %p66, %p67
      %s70 = sadd.s32 %s69, 1
      %p73 = scmp.eq.s32.totalorder %s14, 3
      %p74 = scmp.ne.s32.totalorder %s69, %s71
      %p75 = scmp.eq.s32.totalorder %s14, 0
      %p76 = por %p74, %p75
      %p77 = scmp.ne.s32.totalorder %s69, %s71
      %p78 = scmp.eq.s32.totalorder %s19, 3
      %p79 = por %p77, %p78
      %p80 = scmp.ne.s32.totalorder %s71, %s72
      %p81 = scmp.eq.s32.totalorder %s19, 0
      %p82 = por %p80, %p81
      %p83 = scmp.ne.s32.totalorder %s71, %s72
      %p84 = scmp.eq.s32.totalorder %s20, 3
      %p85 = por %p83, %p84
      %p87 = scmp.ne.s32.totalorder %s72, %s86
      %p88 = scmp.eq.s32.totalorder %s20, 0
      %p89 = por %p87, %p88
      %s91 = sadd.s32 %s90, 1
      %p94 = scmp.eq.s32.totalorder %s14, 3
      %p95 = scmp.ne.s32.totalorder %s90, %s92
      %p96 = scmp.eq.s32.totalorder %s14, 0
      %p97 = por %p95, %p96
      %p98 = scmp.ne.s32.totalorder %s90, %s92
      %p99 = scmp.eq.s32.totalorder %s19, 3
      %p100 = por %p98, %p99
      %p101 = scmp.ne.s32.totalorder %s92, %s93
      %p102 = scmp.eq.s32.totalorder %s19, 0
      %p103 = por %p101, %p102
      %p104 = scmp.ne.s32.totalorder %s92, %s93
      %p105 = scmp.eq.s32.totalorder %s20, 3
      %p106 = por %p104, %p105
      %p108 = scmp.ne.s32.totalorder %s93, %s107
      %p109 = scmp.eq.s32.totalorder %s20, 0
      %p110 = por %p108, %p109
      %s112 = sadd.s32 %s111, 1
      %p115 = scmp.eq.s32.totalorder %s14, 3
      %p116 = scmp.ne.s32.totalorder %s111, %s113
      %p117 = scmp.eq.s32.totalorder %s14, 0
      %p118 = por %p116, %p117
      %p119 = scmp.ne.s32.totalorder %s111, %s113
      %p120 = scmp.eq.s32.totalorder %s19, 3
      %p121 = por %p119, %p120
      %p122 = scmp.ne.s32.totalorder %s113, %s114
      %p123 = scmp.eq.s32.totalorder %s19, 0
      %p124 = por %p122, %p123
      %p125 = scmp.ne.s32.totalorder %s113, %s114
      %p126 = scmp.eq.s32.totalorder %s20, 3
      %p127 = por %p125, %p126
      %p129 = scmp.ne.s32.totalorder %s114, %s128
      %p130 = scmp.eq.s32.totalorder %s20, 0
      %p131 = por %p129, %p130
      %s132 = ssub.s32 %s14, %s21
      %p133 = scmp.eq.s32.totalorder %s132, 0
      %s135 = sadd.s32 %s134, 1
      %s136 = scalar_select %p133, %s134, %s135
      %p139 = pneg %p133
      %p140 = scmp.eq.s32.totalorder %s14, 3
      %p141 = por %p139, %p140
      %p142 = scmp.ne.s32.totalorder %s134, %s137
      %p143 = scmp.eq.s32.totalorder %s14, 0
      %p144 = por %p142, %p143
      %p145 = scmp.ne.s32.totalorder %s134, %s137
      %p146 = scmp.eq.s32.totalorder %s19, 3
      %p147 = por %p145, %p146
      %p148 = scmp.ne.s32.totalorder %s137, %s138
      %p149 = scmp.eq.s32.totalorder %s19, 0
      %p150 = por %p148, %p149
      %p151 = scmp.ne.s32.totalorder %s137, %s138
      %p152 = scmp.eq.s32.totalorder %s20, 3
      %p153 = por %p151, %p152
      %p155 = scmp.ne.s32.totalorder %s138, %s154
      %p156 = scmp.eq.s32.totalorder %s20, 0
      %p157 = por %p155, %p156
      %p158 = scmp.le.s32.totalorder 1, %s14
      %p159 = scmp.lt.s32.totalorder %s14, 5
      %p160 = pnand %p158, %p159
      %p161 = pneg %p160
      // Predicated region
      $region9: #{tpu_custom_call.1} parent=5 // pred_check
        _
      $region10: #{tpu_custom_call.1} parent=5 // pred_check_branch
        %163 = sbr.rel (%p160) target = $region12
      $region11: #{tpu_custom_call.1} parent=5 // pred_region
        %s164 = ssub.s32 %s14, 1
        // Predicated region
        $region13: #{tpu_custom_call.1} parent=11 // pred_check
          %p165 = pneg %p61
        $region14: #{tpu_custom_call.1} parent=11 // pred_check_branch
          %167 = sbr.rel (%p165) target = $region16
        $region15: #{tpu_custom_call.1} parent=11 // pred_region
          _
        $region16: #{tpu_custom_call.1} parent=11 // pred_fallthru
          _
        // Predicated region
        $region17: #{tpu_custom_call.1} parent=11 // pred_check
          %p168 = pneg %p82
        $region18: #{tpu_custom_call.1} parent=11 // pred_check_branch
          %170 = sbr.rel (%p168) target = $region20
        $region19: #{tpu_custom_call.1} parent=11 // pred_region
          _
        $region20: #{tpu_custom_call.1} parent=11 // pred_fallthru
          _
        // Predicated region
        $region21: #{tpu_custom_call.1} parent=11 // pred_check
          %p171 = pneg %p103
        $region22: #{tpu_custom_call.1} parent=11 // pred_check_branch
          %173 = sbr.rel (%p171) target = $region24
        $region23: #{tpu_custom_call.1} parent=11 // pred_region
          _
        $region24: #{tpu_custom_call.1} parent=11 // pred_fallthru
          _
        // Predicated region
        $region25: #{tpu_custom_call.1} parent=11 // pred_check
          %p174 = pneg %p124
        $region26: #{tpu_custom_call.1} parent=11 // pred_check_branch
          %176 = sbr.rel (%p174) target = $region28
        $region27: #{tpu_custom_call.1} parent=11 // pred_region
          _
        $region28: #{tpu_custom_call.1} parent=11 // pred_fallthru
          _
      $region12: #{tpu_custom_call.1} parent=5 // pred_fallthru
        _
      %p177 = scmp.lt.s32.totalorder %s14, 4
      // Predicated region
      $region29: #{tpu_custom_call.1} parent=5 // pred_check
        %p178 = pneg %p177
      $region30: #{tpu_custom_call.1} parent=5 // pred_check_branch
        %180 = sbr.rel (%p178) target = $region32
      $region31: #{tpu_custom_call.1} parent=5 // pred_region
        // Predicated region
        $region33: #{tpu_custom_call.1} parent=31 // pred_check
          %p181 = pneg %p34
        $region34: #{tpu_custom_call.1} parent=31 // pred_check_branch
          %183 = sbr.rel (%p181) target = $region36
        $region35: #{tpu_custom_call.1} parent=31 // pred_region
          %s184 = smul.u32 4, %s14
          %p185 = scmp.lt.s32.totalorder %s184, 15
          %s186 = scalar_select %p185, %s184, 15
          %s187 = smul.addr %s186, 8
          %s188 = scalar_lea.vmem %s0, %s187
          %s189 = smul.u32 4, %s14
        $region36: #{tpu_custom_call.1} parent=31 // pred_fallthru
          _
      $region32: #{tpu_custom_call.1} parent=5 // pred_fallthru
        _
      %p190 = scmp.le.s32.totalorder 1, %s14
      %p191 = scmp.lt.s32.totalorder %s14, 5
      %p192 = pnand %p190, %p191
      %p193 = pneg %p192
      // Predicated region
      $region37: #{tpu_custom_call.1} parent=5 // pred_check
        _
      $region38: #{tpu_custom_call.1} parent=5 // pred_check_branch
        %195 = sbr.rel (%p192) target = $region40
      $region39: #{tpu_custom_call.1} parent=5 // pred_region
        %s196 = ssub.s32 %s14, 1
        %s197 = smul.u32 4, %s19
        %p198 = scmp.lt.s32.totalorder %s197, 15
        %s199 = scalar_select %p198, %s197, 15
        %s200 = smul.addr %s199, 8
        %s201 = scalar_lea.vmem %s0, %s200
        %p202 = pneg %p40
        %p203 = pneg %p37
        %p204 = pneg %p61
        %p205 = pneg %p58
        %p206 = pneg %p82
        %p207 = pneg %p79
        %p208 = pneg %p103
        %p209 = pneg %p100
        %p210 = pneg %p124
        %p211 = pneg %p121
        %p212 = pneg %p150
        %p213 = pneg %p147
        %s214 = sand.u32 %s137, 1
        %s215 = scalar_lea.sflag [#allocation3], %s214
        %s216 = sand.u32 %s137, 1
        %s217 = smul.addr %s216, 32
        %s218 = scalar_lea.vmem [#allocation2], %s217
        %s219 = smul.u32 4, %s19
        %p220 = scmp.lt.s32.totalorder %s219, 15
        %s221 = scalar_select %p220, %s219, 15
        %s222 = smul.addr %s221, 8
        %s223 = scalar_lea.vmem %s0, %s222
        %s224 = smul.u32 4, %s19
        %s225 = smul.u32 4, %s19
        %v227 = vld [vmem:[%s223] sm:$0xff]
        %v228 = vld [vmem:[%s223 + $0x8] sm:$0xff]
        %v229 = vld [vmem:[%s223 + $0x10] sm:$0xff]
        %v230 = vld [vmem:[%s223 + $0x18] sm:$0xff]
        %v231 = vpack.c.bf16 %v228, %v227
        %v232 = vpack.c.bf16 %v230, %v229
        %v233 = vld [vmem:[%s1] sm:$0xff]
        %v234 = vld [vmem:[%s1 + $0x8] sm:$0xff]
        %v235 = vld [vmem:[%s1 + $0x10] sm:$0xff]
        %v236 = vld [vmem:[%s1 + $0x18] sm:$0xff]
        %v241 = vunpack.c.l.b16 %v233
        %v242 = vunpack.c.h.b16 %v233
        %v243 = vunpack.c.l.b16 %v234
        %v244 = vunpack.c.h.b16 %v234
        %v245 = vunpack.c.l.b16 %v235
        %v246 = vunpack.c.h.b16 %v235
        %v247 = vunpack.c.l.b16 %v236
        %v248 = vunpack.c.h.b16 %v236
        %v249 = vpack.c.b16 %v243, %v241
        %v250 = vpack.c.b16 %v244, %v242
        %v251 = vpack.c.b16 %v247, %v245
        %v252 = vpack.c.b16 %v248, %v246
        %vm257 = vcmask 261120
        %v259 = vsel %vm257, %v231, 0
        %v262 = vsel %vm257, %v232, 0
        %264 = vmatprep.subr.bf16.mxu0 %v250
        %265 = vmatpush1.bf16.msra.mxu0 %v249
        %266 = vmatprep.subr.bf16.mxu0 %v252
        %267 = vmatpush1.bf16.msra.mxu0 %v251
        %268 = vmatprep.subr.bf16.mxu0 0
        %269 = vmatpush1.bf16.msra.mxu0 0
        %270 = vmatprep.subr.bf16.mxu0 0
        %271 = vmatpush1.bf16.msra.mxu0 0
        %272 = vmatprep.subr.bf16.mxu0 0
        %273 = vmatpush1.bf16.msra.mxu0 0
        %274 = vmatprep.subr.bf16.mxu0 0
        %275 = vmatpush1.bf16.msra.mxu0 0
        %276 = vmatprep.subr.bf16.mxu0 0
        %277 = vmatpush1.bf16.msra.mxu0 0
        %278 = vmatprep.subr.bf16.mxu0 0
        %279 = vmatpush1.bf16.msra.mxu0 0
        %280 = vmatprep.subr.bf16.mxu0 0
        %281 = vmatpush1.bf16.msra.mxu0 0
        %282 = vmatprep.subr.bf16.mxu0 0
        %283 = vmatpush1.bf16.msra.mxu0 0
        %284 = vmatprep.subr.bf16.mxu0 0
        %285 = vmatpush1.bf16.msra.mxu0 0
        %286 = vmatprep.subr.bf16.mxu0 0
        %287 = vmatpush1.bf16.msra.mxu0 0
        %288 = vmatprep.subr.bf16.mxu0 0
        %289 = vmatpush1.bf16.msra.mxu0 0
        %290 = vmatprep.subr.bf16.mxu0 0
        %291 = vmatpush1.bf16.msra.mxu0 0
        %292 = vmatprep.subr.bf16.mxu0 0
        %293 = vmatpush1.bf16.msra.mxu0 0
        %294 = vmatprep.subr.bf16.mxu0 0
        %295 = vmatpush1.bf16.msra.mxu0 0
        %296 = vmatprep.mubr.bf16.mxu0 0
        %297 = vmatmul.mubr.bf16.gmra.mrb[0].mxu0 %v259
        %v298 = vpop.f32.mrb[0].mxu0
        %v299 = vadd.f32 0.0, %v298
        %v300 = vpop.f32.mrb[0].mxu0
        %v301 = vadd.f32 0.0, %v300
        %v302 = vpop.f32.mrb[0].mxu0
        %v303 = vadd.f32 0.0, %v302
        %v304 = vpop.f32.mrb[0].mxu0
        %v305 = vadd.f32 0.0, %v304
        %306 = vmatprep.mubr.bf16.mxu0 0
        %307 = vmatmul.mubr.bf16.gmra.mrb[0].mxu0 %v262
        %v308 = vpop.f32.mrb[0].mxu0
        %v309 = vadd.f32 0.0, %v308
        %v310 = vpop.f32.mrb[0].mxu0
        %v311 = vadd.f32 0.0, %v310
        %v312 = vpop.f32.mrb[0].mxu0
        %v313 = vadd.f32 0.0, %v312
        %v314 = vpop.f32.mrb[0].mxu0
        %v315 = vadd.f32 0.0, %v314
        %316 = vdwg.mxu0
        %v317 = vld [vmem:[%s2] sm:$0x1]
        %v319 = vlaneseq
        %v320 = vshrl.u32 %v319, 7
        %v321 = vsub.s32 0, %v320
        %v322 = vrot.slane %v317, %v321
        %v324 = vadd.f32 %v299, %v322
        %v325 = vadd.f32 %v303, %v322
        %v326 = vadd.f32 %v309, %v322
        %v327 = vadd.f32 %v313, %v322
        %v328 = vmax.f32 %v324, 0.0
        %v329 = vmax.f32 %v325, 0.0
        %v330 = vmax.f32 %v326, 0.0
        %v331 = vmax.f32 %v327, 0.0
        %v332 = vpack.c.bf16 %v329, %v328
        %v333 = vpack.c.bf16 %v331, %v330
        %v334 = vld [vmem:[%s3] sm:$0xf]
        %v335 = vld [vmem:[%s3 + $0x4] sm:$0xf]
        %v336 = vld [vmem:[%s3 + $0x8] sm:$0xf]
        %v337 = vld [vmem:[%s3 + $0xc] sm:$0xf]
        %v338 = vld [vmem:[%s3 + $0x10] sm:$0xf]
        %v339 = vld [vmem:[%s3 + $0x14] sm:$0xf]
        %v340 = vld [vmem:[%s3 + $0x18] sm:$0xf]
        %v341 = vld [vmem:[%s3 + $0x1c] sm:$0xf]
        %v342 = vld [vmem:[%s3 + $0x20] sm:$0xf]
        %v343 = vld [vmem:[%s3 + $0x24] sm:$0xf]
        %v344 = vld [vmem:[%s3 + $0x28] sm:$0xf]
        %v345 = vld [vmem:[%s3 + $0x2c] sm:$0xf]
        %v346 = vld [vmem:[%s3 + $0x30] sm:$0xf]
        %v347 = vld [vmem:[%s3 + $0x34] sm:$0xf]
        %v348 = vld [vmem:[%s3 + $0x38] sm:$0xf]
        %v349 = vld [vmem:[%s3 + $0x3c] sm:$0xf]
        %v350 = vld [vmem:[%s4] sm:$0x1]
        %v352 = vlaneseq
        %v353 = vshrl.u32 %v352, 7
        %v354 = vsub.s32 0, %v353
        %v355 = vrot.slane %v350, %v354
        %v373 = vunpack.c.l.b16 %v334
        %v374 = vunpack.c.l.b16 %v335
        %v375 = vunpack.c.l.b16 %v336
        %v376 = vunpack.c.l.b16 %v337
        %v377 = vunpack.c.l.b16 %v338
        %v378 = vunpack.c.l.b16 %v339
        %v379 = vunpack.c.l.b16 %v340
        %v380 = vunpack.c.l.b16 %v341
        %v381 = vunpack.c.l.b16 %v342
        %v382 = vunpack.c.l.b16 %v343
        %v383 = vunpack.c.l.b16 %v344
        %v384 = vunpack.c.l.b16 %v345
        %v385 = vunpack.c.l.b16 %v346
        %v386 = vunpack.c.l.b16 %v347
        %v387 = vunpack.c.l.b16 %v348
        %v388 = vunpack.c.l.b16 %v349
        %v389 = vpack.c.b16 %v374, %v373
        %v390 = vpack.c.b16 %v376, %v375
        %v391 = vpack.c.b16 %v378, %v377
        %v392 = vpack.c.b16 %v380, %v379
        %v393 = vpack.c.b16 %v382, %v381
        %v394 = vpack.c.b16 %v384, %v383
        %v395 = vpack.c.b16 %v386, %v385
        %v396 = vpack.c.b16 %v388, %v387
        %405 = vmatprep.subr.bf16.mxu0 0
        %406 = vmatpush1.bf16.msra.mxu0 %v389
        %407 = vmatprep.subr.bf16.mxu0 0
        %408 = vmatpush1.bf16.msra.mxu0 %v390
        %409 = vmatprep.subr.bf16.mxu0 0
        %410 = vmatpush1.bf16.msra.mxu0 %v391
        %411 = vmatprep.subr.bf16.mxu0 0
        %412 = vmatpush1.bf16.msra.mxu0 %v392
        %413 = vmatprep.subr.bf16.mxu0 0
        %414 = vmatpush1.bf16.msra.mxu0 %v393
        %415 = vmatprep.subr.bf16.mxu0 0
        %416 = vmatpush1.bf16.msra.mxu0 %v394
        %417 = vmatprep.subr.bf16.mxu0 0
        %418 = vmatpush1.bf16.msra.mxu0 %v395
        %419 = vmatprep.subr.bf16.mxu0 0
        %420 = vmatpush1.bf16.msra.mxu0 %v396
        %421 = vmatprep.subr.bf16.mxu0 0
        %422 = vmatpush1.bf16.msra.mxu0 0
        %423 = vmatprep.subr.bf16.mxu0 0
        %424 = vmatpush1.bf16.msra.mxu0 0
        %425 = vmatprep.subr.bf16.mxu0 0
        %426 = vmatpush1.bf16.msra.mxu0 0
        %427 = vmatprep.subr.bf16.mxu0 0
        %428 = vmatpush1.bf16.msra.mxu0 0
        %429 = vmatprep.subr.bf16.mxu0 0
        %430 = vmatpush1.bf16.msra.mxu0 0
        %431 = vmatprep.subr.bf16.mxu0 0
        %432 = vmatpush1.bf16.msra.mxu0 0
        %433 = vmatprep.subr.bf16.mxu0 0
        %434 = vmatpush1.bf16.msra.mxu0 0
        %435 = vmatprep.subr.bf16.mxu0 0
        %436 = vmatpush1.bf16.msra.mxu0 0
        %437 = vmatprep.mubr.bf16.mxu0 0
        %438 = vmatmul.mubr.bf16.gmra.mrb[0].mxu0 %v332
        %v439 = vpop.f32.mrb[0].mxu0
        %v440 = vadd.f32 %v355, %v439
        %v441 = vpop.f32.mrb[0].mxu0
        %v442 = vpop.f32.mrb[0].mxu0
        %v443 = vadd.f32 %v355, %v442
        %v444 = vpop.f32.mrb[0].mxu0
        %445 = vmatprep.mubr.bf16.mxu0 0
        %446 = vmatmul.mubr.bf16.gmra.mrb[0].mxu0 %v333
        %v447 = vpop.f32.mrb[0].mxu0
        %v448 = vadd.f32 %v355, %v447
        %v449 = vpop.f32.mrb[0].mxu0
        %v450 = vpop.f32.mrb[0].mxu0
        %v451 = vadd.f32 %v355, %v450
        %v452 = vpop.f32.mrb[0].mxu0
        %453 = vdwg.mxu0
        %v454 = vmax.f32 %v440, 0.0
        %v455 = vmax.f32 %v443, 0.0
        %v456 = vmax.f32 %v448, 0.0
        %v457 = vmax.f32 %v451, 0.0
        %v458 = vadd.f32 %v454, %v301
        %v459 = vadd.f32 %v455, %v305
        %v460 = vadd.f32 %v456, %v311
        %v461 = vadd.f32 %v457, %v315
        %462 = vst [vmem:[%s218] sm:$0xff] %v458
        %463 = vst [vmem:[%s218 + $0x8] sm:$0xff] %v459
        %464 = vst [vmem:[%s218 + $0x10] sm:$0xff] %v460
        %465 = vst [vmem:[%s218 + $0x18] sm:$0xff] %v461
        %s466 = sand.u32 %s137, 1
        %s467 = scalar_lea.sflag [#allocation3], %s466
        %s468 = sand.u32 %s137, 1
        %s469 = smul.addr %s468, 32
        %s470 = scalar_lea.vmem [#allocation2], %s469
        // Predicated region
        $region41: #{tpu_custom_call.1} parent=39 // pred_check
          %p471 = pneg %p147
        $region42: #{tpu_custom_call.1} parent=39 // pred_check_branch
          %473 = sbr.rel (%p471) target = $region44
        $region43: #{tpu_custom_call.1} parent=39 // pred_region
          %s474 = smul.u32 4, %s19
          %s476 = ssub.s32 512, 512
          %477 = vsyncadd %s467, %s476
          %s478 = smul.addr %s474, 128
          %s479 = scalar_lea.hbm %s5, %s478
          %s480 = sshll.u32 %s470, 4
          %s481 = int_to_ptr.vmem [resolvable:$true] %s480
          %486 = dma.vmem_to_hbm [thread:$0]  %s481, 512, %s479, %s467, 128, 128, 8
        $region44: #{tpu_custom_call.1} parent=39 // pred_fallthru
          _
      $region40: #{tpu_custom_call.1} parent=5 // pred_fallthru
        _
      %p487 = scmp.le.s32.totalorder 2, %s14
      // Predicated region
      $region45: #{tpu_custom_call.1} parent=5 // pred_check
        %p488 = pneg %p487
      $region46: #{tpu_custom_call.1} parent=5 // pred_check_branch
        %490 = sbr.rel (%p488) target = $region48
      $region47: #{tpu_custom_call.1} parent=5 // pred_region
        %s491 = ssub.s32 %s14, 2
        // Predicated region
        $region49: #{tpu_custom_call.1} parent=47 // pred_check
          %p492 = pneg %p153
        $region50: #{tpu_custom_call.1} parent=47 // pred_check_branch
          %494 = sbr.rel (%p492) target = $region52
        $region51: #{tpu_custom_call.1} parent=47 // pred_region
          %s495 = sand.u32 %s138, 1
          %s496 = scalar_lea.sflag [#allocation3], %s495
          %s497 = sand.u32 %s138, 1
          %s498 = smul.addr %s497, 32
          %s499 = scalar_lea.vmem [#allocation2], %s498
          %500 = dma.done %s496, 512
        $region52: #{tpu_custom_call.1} parent=47 // pred_fallthru
          _
      $region48: #{tpu_custom_call.1} parent=5 // pred_fallthru
        _
    $region6: #{tpu_custom_call.1} parent=1 // loop_footer
      %s18 = sadd.s32 1, %s14
    $region7: #{tpu_custom_call.1} parent=1 // loop_footer_branch
      %13 = sbr.rel target = $region3
    $region8: #{tpu_custom_call.1} parent=1 // loop_exit
      _
    %501 = vsyncpa [#allocation3], 1
    %s502 = scalar_lea.sflag [#allocation3], 1
    %503 = vsyncpa %s502, 1

// kernel: tpu_custom_call.1
$region0: #{tpu_custom_call.1}
  #allocation0 [shape = 'u32[]', space=smem, size = 0x4, offset = 0x4, fixed_abs, tag = 'smem constant byte address 0x4 - core index']
  #allocation1 [shape = 'u32[144,128]{1,0:T(1,128)}', space=vmem, size = 0x12000, scoped, tag = 'internal scratch']
  %s0 = inlined_call_operand.vmem [shape: f32[128,32], index: 0, kind: input, shape index: {}]
  %s1 = inlined_call_operand.vmem [shape: bf16[32,256], index: 1, kind: input, shape index: {}]
  %s2 = inlined_call_operand.vmem [shape: f32[1,128], index: 2, kind: input, shape index: {}]
  %s3 = inlined_call_operand.vmem [shape: bf16[128,128], index: 3, kind: input, shape index: {}]
  %s4 = inlined_call_operand.vmem [shape: f32[1,128], index: 4, kind: input, shape index: {}]
  %s5 = inlined_call_operand.hbm [shape: f32[128,128], index: 5, kind: output, shape index: {}]
  %s6 = sld [smem:[#allocation0]]
  $region53: #{tpu_custom_call.1} parent=0
    _
  %s8 = ssub.s32 1, %s6
  %s9 = scalar_select 0, %s8, %s6
  $region1: #{tpu_custom_call.1} parent=0
    #allocation2 [shape = 'u8[32768]{0}', space=vmem, size = 0x8000, scoped, tag = 'output window, operand 0']
    #allocation3 [shape = 's32[2]{0}', space=sflag, size = 0x8, scoped, tag = 'scoped memory for tpu_custom_call.1']
    %10 = vsyncpa [#allocation3], 0
    %s11 = scalar_lea.sflag [#allocation3], 1
    %12 = vsyncpa %s11, 0
    loop: start=0, step=1, limit=6
    $region2: #{tpu_custom_call.1} parent=1 // loop_pre_header
      _
    $region3: #{tpu_custom_call.1} parent=1 // loop_header
      %s14 = sphi 0, %s18
      %p15 = scmp.ge.s32.totalorder %s14, 6
      %s24 = sphi 0, %s26
      %s27 = sphi 0, %s24
      %s28 = sphi 0, %s27
      %s44 = sphi 0, %s28
      %s48 = sphi 0, %s48
      %s50 = sphi 0, %s48
      %s51 = sphi 0, %s50
      %s65 = sphi 0, %s51
      %s69 = sphi 0, %s69
      %s71 = sphi 0, %s69
      %s72 = sphi 0, %s71
      %s86 = sphi 0, %s72
      %s90 = sphi 0, %s90
      %s92 = sphi 0, %s90
      %s93 = sphi 0, %s92
      %s107 = sphi 0, %s93
      %s111 = sphi 0, %s111
      %s113 = sphi 0, %s111
      %s114 = sphi 0, %s113
      %s128 = sphi 0, %s114
      %s134 = sphi 0, %s136
      %s137 = sphi 0, %s134
      %s138 = sphi 0, %s137
      %s154 = sphi 0, %s138
    $region4: #{tpu_custom_call.1} parent=1 // loop_header_branch
      %17 = sbr.rel (%p15) target = $region8
    $region5: #{tpu_custom_call.1} parent=1 // loop_body
      %s19 = ssub.s32 %s14, 1
      %s20 = ssub.s32 %s14, 2
      %s21 = sadd.s32 %s14, 1
      %s22 = ssub.s32 %s14, %s21
      %p23 = scmp.eq.s32.totalorder %s22, 0
      %s25 = sadd.s32 %s24, 1
      %s26 = scalar_select %p23, %s24, %s25
      %p29 = pneg %p23
      %p30 = scmp.eq.s32.totalorder %s14, 3
      %p31 = por %p29, %p30
      %p32 = scmp.ne.s32.totalorder %s24, %s27
      %p33 = scmp.eq.s32.totalorder %s14, 0
      %p34 = por %p32, %p33
      %p35 = scmp.ne.s32.totalorder %s24, %s27
      %p36 = scmp.eq.s32.totalorder %s19, 3
      %p37 = por %p35, %p36
      %p38 = scmp.ne.s32.totalorder %s27, %s28
      %p39 = scmp.eq.s32.totalorder %s19, 0
      %p40 = por %p38, %p39
      %p41 = scmp.ne.s32.totalorder %s27, %s28
      %p42 = scmp.eq.s32.totalorder %s20, 3
      %p43 = por %p41, %p42
      %p45 = scmp.ne.s32.totalorder %s28, %s44
      %p46 = scmp.eq.s32.totalorder %s20, 0
      %p47 = por %p45, %p46
      %s49 = sadd.s32 %s48, 1
      %p52 = scmp.eq.s32.totalorder %s14, 3
      %p53 = scmp.ne.s32.totalorder %s48, %s50
      %p54 = scmp.eq.s32.totalorder %s14, 0
      %p55 = por %p53, %p54
      %p56 = scmp.ne.s32.totalorder %s48, %s50
      %p57 = scmp.eq.s32.totalorder %s19, 3
      %p58 = por %p56, %p57
      %p59 = scmp.ne.s32.totalorder %s50, %s51
      %p60 = scmp.eq.s32.totalorder %s19, 0
      %p61 = por %p59, %p60
      %p62 = scmp.ne.s32.totalorder %s50, %s51
      %p63 = scmp.eq.s32.totalorder %s20, 3
      %p64 = por %p62, %p63
      %p66 = scmp.ne.s32.totalorder %s51, %s65
      %p67 = scmp.eq.s32.totalorder %s20, 0
      %p68 = por %p66, %p67
      %s70 = sadd.s32 %s69, 1
      %p73 = scmp.eq.s32.totalorder %s14, 3
      %p74 = scmp.ne.s32.totalorder %s69, %s71
      %p75 = scmp.eq.s32.totalorder %s14, 0
      %p76 = por %p74, %p75
      %p77 = scmp.ne.s32.totalorder %s69, %s71
      %p78 = scmp.eq.s32.totalorder %s19, 3
      %p79 = por %p77, %p78
      %p80 = scmp.ne.s32.totalorder %s71, %s72
      %p81 = scmp.eq.s32.totalorder %s19, 0
      %p82 = por %p80, %p81
      %p83 = scmp.ne.s32.totalorder %s71, %s72
      %p84 = scmp.eq.s32.totalorder %s20, 3
      %p85 = por %p83, %p84
      %p87 = scmp.ne.s32.totalorder %s72, %s86
      %p88 = scmp.eq.s32.totalorder %s20, 0
      %p89 = por %p87, %p88
      %s91 = sadd.s32 %s90, 1
      %p94 = scmp.eq.s32.totalorder %s14, 3
      %p95 = scmp.ne.s32.totalorder %s90, %s92
      %p96 = scmp.eq.s32.totalorder %s14, 0
      %p97 = por %p95, %p96
      %p98 = scmp.ne.s32.totalorder %s90, %s92
      %p99 = scmp.eq.s32.totalorder %s19, 3
      %p100 = por %p98, %p99
      %p101 = scmp.ne.s32.totalorder %s92, %s93
      %p102 = scmp.eq.s32.totalorder %s19, 0
      %p103 = por %p101, %p102
      %p104 = scmp.ne.s32.totalorder %s92, %s93
      %p105 = scmp.eq.s32.totalorder %s20, 3
      %p106 = por %p104, %p105
      %p108 = scmp.ne.s32.totalorder %s93, %s107
      %p109 = scmp.eq.s32.totalorder %s20, 0
      %p110 = por %p108, %p109
      %s112 = sadd.s32 %s111, 1
      %p115 = scmp.eq.s32.totalorder %s14, 3
      %p116 = scmp.ne.s32.totalorder %s111, %s113
      %p117 = scmp.eq.s32.totalorder %s14, 0
      %p118 = por %p116, %p117
      %p119 = scmp.ne.s32.totalorder %s111, %s113
      %p120 = scmp.eq.s32.totalorder %s19, 3
      %p121 = por %p119, %p120
      %p122 = scmp.ne.s32.totalorder %s113, %s114
      %p123 = scmp.eq.s32.totalorder %s19, 0
      %p124 = por %p122, %p123
      %p125 = scmp.ne.s32.totalorder %s113, %s114
      %p126 = scmp.eq.s32.totalorder %s20, 3
      %p127 = por %p125, %p126
      %p129 = scmp.ne.s32.totalorder %s114, %s128
      %p130 = scmp.eq.s32.totalorder %s20, 0
      %p131 = por %p129, %p130
      %s132 = ssub.s32 %s14, %s21
      %p133 = scmp.eq.s32.totalorder %s132, 0
      %s135 = sadd.s32 %s134, 1
      %s136 = scalar_select %p133, %s134, %s135
      %p139 = pneg %p133
      %p140 = scmp.eq.s32.totalorder %s14, 3
      %p141 = por %p139, %p140
      %p142 = scmp.ne.s32.totalorder %s134, %s137
      %p143 = scmp.eq.s32.totalorder %s14, 0
      %p144 = por %p142, %p143
      %p145 = scmp.ne.s32.totalorder %s134, %s137
      %p146 = scmp.eq.s32.totalorder %s19, 3
      %p147 = por %p145, %p146
      %p148 = scmp.ne.s32.totalorder %s137, %s138
      %p149 = scmp.eq.s32.totalorder %s19, 0
      %p150 = por %p148, %p149
      %p151 = scmp.ne.s32.totalorder %s137, %s138
      %p152 = scmp.eq.s32.totalorder %s20, 3
      %p153 = por %p151, %p152
      %p155 = scmp.ne.s32.totalorder %s138, %s154
      %p156 = scmp.eq.s32.totalorder %s20, 0
      %p157 = por %p155, %p156
      %p158 = scmp.le.s32.totalorder 1, %s14
      %p159 = scmp.lt.s32.totalorder %s14, 5
      %p160 = pnand %p158, %p159
      %p161 = pneg %p160
      // Predicated region
      $region9: #{tpu_custom_call.1} parent=5 // pred_check
        _
      $region10: #{tpu_custom_call.1} parent=5 // pred_check_branch
        %163 = sbr.rel (%p160) target = $region12
      $region11: #{tpu_custom_call.1} parent=5 // pred_region
        %s164 = ssub.s32 %s14, 1
        // Predicated region
        $region13: #{tpu_custom_call.1} parent=11 // pred_check
          %p165 = pneg %p61
        $region14: #{tpu_custom_call.1} parent=11 // pred_check_branch
          %167 = sbr.rel (%p165) target = $region16
        $region15: #{tpu_custom_call.1} parent=11 // pred_region
          _
        $region16: #{tpu_custom_call.1} parent=11 // pred_fallthru
          _
        // Predicated region
        $region17: #{tpu_custom_call.1} parent=11 // pred_check
          %p168 = pneg %p82
        $region18: #{tpu_custom_call.1} parent=11 // pred_check_branch
          %170 = sbr.rel (%p168) target = $region20
        $region19: #{tpu_custom_call.1} parent=11 // pred_region
          _
        $region20: #{tpu_custom_call.1} parent=11 // pred_fallthru
          _
        // Predicated region
        $region21: #{tpu_custom_call.1} parent=11 // pred_check
          %p171 = pneg %p103
        $region22: #{tpu_custom_call.1} parent=11 // pred_check_branch
          %173 = sbr.rel (%p171) target = $region24
        $region23: #{tpu_custom_call.1} parent=11 // pred_region
          _
        $region24: #{tpu_custom_call.1} parent=11 // pred_fallthru
          _
        // Predicated region
        $region25: #{tpu_custom_call.1} parent=11 // pred_check
          %p174 = pneg %p124
        $region26: #{tpu_custom_call.1} parent=11 // pred_check_branch
          %176 = sbr.rel (%p174) target = $region28
        $region27: #{tpu_custom_call.1} parent=11 // pred_region
          _
        $region28: #{tpu_custom_call.1} parent=11 // pred_fallthru
          _
      $region12: #{tpu_custom_call.1} parent=5 // pred_fallthru
        _
      %p177 = scmp.lt.s32.totalorder %s14, 4
      // Predicated region
      $region29: #{tpu_custom_call.1} parent=5 // pred_check
        %p178 = pneg %p177
      $region30: #{tpu_custom_call.1} parent=5 // pred_check_branch
        %180 = sbr.rel (%p178) target = $region32
      $region31: #{tpu_custom_call.1} parent=5 // pred_region
        // Predicated region
        $region33: #{tpu_custom_call.1} parent=31 // pred_check
          %p181 = pneg %p34
        $region34: #{tpu_custom_call.1} parent=31 // pred_check_branch
          %183 = sbr.rel (%p181) target = $region36
        $region35: #{tpu_custom_call.1} parent=31 // pred_region
          %s184 = smul.u32 4, %s14
          %p185 = scmp.lt.s32.totalorder %s184, 15
          %s186 = scalar_select %p185, %s184, 15
          %s187 = smul.addr %s186, 8
          %s188 = scalar_lea.vmem %s0, %s187
          %s189 = smul.u32 4, %s14
        $region36: #{tpu_custom_call.1} parent=31 // pred_fallthru
          _
      $region32: #{tpu_custom_call.1} parent=5 // pred_fallthru
        _
      %p190 = scmp.le.s32.totalorder 1, %s14
      %p191 = scmp.lt.s32.totalorder %s14, 5
      %p192 = pnand %p190, %p191
      %p193 = pneg %p192
      // Predicated region
      $region37: #{tpu_custom_call.1} parent=5 // pred_check
        _
      $region38: #{tpu_custom_call.1} parent=5 // pred_check_branch
        %195 = sbr.rel (%p192) target = $region40
      $region39: #{tpu_custom_call.1} parent=5 // pred_region
        %s196 = ssub.s32 %s14, 1
        %s197 = smul.u32 4, %s19
        %p198 = scmp.lt.s32.totalorder %s197, 15
        %s199 = scalar_select %p198, %s197, 15
        %s200 = smul.addr %s199, 8
        %s201 = scalar_lea.vmem %s0, %s200
        %p202 = pneg %p40
        %p203 = pneg %p37
        %p204 = pneg %p61
        %p205 = pneg %p58
        %p206 = pneg %p82
        %p207 = pneg %p79
        %p208 = pneg %p103
        %p209 = pneg %p100
        %p210 = pneg %p124
        %p211 = pneg %p121
        %p212 = pneg %p150
        %p213 = pneg %p147
        %s214 = sand.u32 %s137, 1
        %s215 = scalar_lea.sflag [#allocation3], %s214
        %s216 = sand.u32 %s137, 1
        %s217 = smul.addr %s216, 32
        %s218 = scalar_lea.vmem [#allocation2], %s217
        %s219 = smul.u32 4, %s19
        %p220 = scmp.lt.s32.totalorder %s219, 15
        %s221 = scalar_select %p220, %s219, 15
        %s222 = smul.addr %s221, 8
        %s223 = scalar_lea.vmem %s0, %s222
        %s224 = smul.u32 4, %s19
        %s225 = smul.u32 4, %s19
        %v227 = vld [vmem:[%s223] sm:$0xff]
        %v228 = vld [vmem:[%s223 + $0x8] sm:$0xff]
        %v229 = vld [vmem:[%s223 + $0x10] sm:$0xff]
        %v230 = vld [vmem:[%s223 + $0x18] sm:$0xff]
        %v231 = vpack.c.bf16 %v228, %v227
        %v232 = vpack.c.bf16 %v230, %v229
        %v233 = vld [vmem:[%s1] sm:$0xff]
        %v234 = vld [vmem:[%s1 + $0x8] sm:$0xff]
        %v235 = vld [vmem:[%s1 + $0x10] sm:$0xff]
        %v236 = vld [vmem:[%s1 + $0x18] sm:$0xff]
        %v241 = vunpack.c.l.b16 %v233
        %v242 = vunpack.c.h.b16 %v233
        %v243 = vunpack.c.l.b16 %v234
        %v244 = vunpack.c.h.b16 %v234
        %v245 = vunpack.c.l.b16 %v235
        %v246 = vunpack.c.h.b16 %v235
        %v247 = vunpack.c.l.b16 %v236
        %v248 = vunpack.c.h.b16 %v236
        %v249 = vpack.c.b16 %v243, %v241
        %v250 = vpack.c.b16 %v244, %v242
        %v251 = vpack.c.b16 %v247, %v245
        %v252 = vpack.c.b16 %v248, %v246
        %vm257 = vcmask 261120
        %v259 = vsel %vm257, %v231, 0
        %v262 = vsel %vm257, %v232, 0
        %264 = vmatprep.subr.bf16.mxu0 %v250
        %265 = vmatpush1.bf16.msra.mxu0 %v249
        %266 = vmatprep.subr.bf16.mxu0 %v252
        %267 = vmatpush1.bf16.msra.mxu0 %v251
        %268 = vmatprep.subr.bf16.mxu0 0
        %269 = vmatpush1.bf16.msra.mxu0 0
        %270 = vmatprep.subr.bf16.mxu0 0
        %271 = vmatpush1.bf16.msra.mxu0 0
        %272 = vmatprep.subr.bf16.mxu0 0
        %273 = vmatpush1.bf16.msra.mxu0 0
        %274 = vmatprep.subr.bf16.mxu0 0
        %275 = vmatpush1.bf16.msra.mxu0 0
        %276 = vmatprep.subr.bf16.mxu0 0
        %277 = vmatpush1.bf16.msra.mxu0 0
        %278 = vmatprep.subr.bf16.mxu0 0
        %279 = vmatpush1.bf16.msra.mxu0 0
        %280 = vmatprep.subr.bf16.mxu0 0
        %281 = vmatpush1.bf16.msra.mxu0 0
        %282 = vmatprep.subr.bf16.mxu0 0
        %283 = vmatpush1.bf16.msra.mxu0 0
        %284 = vmatprep.subr.bf16.mxu0 0
        %285 = vmatpush1.bf16.msra.mxu0 0
        %286 = vmatprep.subr.bf16.mxu0 0
        %287 = vmatpush1.bf16.msra.mxu0 0
        %288 = vmatprep.subr.bf16.mxu0 0
        %289 = vmatpush1.bf16.msra.mxu0 0
        %290 = vmatprep.subr.bf16.mxu0 0
        %291 = vmatpush1.bf16.msra.mxu0 0
        %292 = vmatprep.subr.bf16.mxu0 0
        %293 = vmatpush1.bf16.msra.mxu0 0
        %294 = vmatprep.subr.bf16.mxu0 0
        %295 = vmatpush1.bf16.msra.mxu0 0
        %296 = vmatprep.mubr.bf16.mxu0 0
        %297 = vmatmul.mubr.bf16.gmra.mrb[0].mxu0 %v259
        %v298 = vpop.f32.mrb[0].mxu0
        %v299 = vadd.f32 0.0, %v298
        %v300 = vpop.f32.mrb[0].mxu0
        %v301 = vadd.f32 0.0, %v300
        %v302 = vpop.f32.mrb[0].mxu0
        %v303 = vadd.f32 0.0, %v302
        %v304 = vpop.f32.mrb[0].mxu0
        %v305 = vadd.f32 0.0, %v304
        %306 = vmatprep.mubr.bf16.mxu0 0
        %307 = vmatmul.mubr.bf16.gmra.mrb[0].mxu0 %v262
        %v308 = vpop.f32.mrb[0].mxu0
        %v309 = vadd.f32 0.0, %v308
        %v310 = vpop.f32.mrb[0].mxu0
        %v311 = vadd.f32 0.0, %v310
        %v312 = vpop.f32.mrb[0].mxu0
        %v313 = vadd.f32 0.0, %v312
        %v314 = vpop.f32.mrb[0].mxu0
        %v315 = vadd.f32 0.0, %v314
        %316 = vdwg.mxu0
        %v317 = vld [vmem:[%s2] sm:$0x1]
        %v319 = vlaneseq
        %v320 = vshrl.u32 %v319, 7
        %v321 = vsub.s32 0, %v320
        %v322 = vrot.slane %v317, %v321
        %v324 = vadd.f32 %v299, %v322
        %v325 = vadd.f32 %v303, %v322
        %v326 = vadd.f32 %v309, %v322
        %v327 = vadd.f32 %v313, %v322
        %v328 = vmax.f32 %v324, 0.0
        %v329 = vmax.f32 %v325, 0.0
        %v330 = vmax.f32 %v326, 0.0
        %v331 = vmax.f32 %v327, 0.0
        %v332 = vpack.c.bf16 %v329, %v328
        %v333 = vpack.c.bf16 %v331, %v330
        %v334 = vld [vmem:[%s3] sm:$0xf]
        %v335 = vld [vmem:[%s3 + $0x4] sm:$0xf]
        %v336 = vld [vmem:[%s3 + $0x8] sm:$0xf]
        %v337 = vld [vmem:[%s3 + $0xc] sm:$0xf]
        %v338 = vld [vmem:[%s3 + $0x10] sm:$0xf]
        %v339 = vld [vmem:[%s3 + $0x14] sm:$0xf]
        %v340 = vld [vmem:[%s3 + $0x18] sm:$0xf]
        %v341 = vld [vmem:[%s3 + $0x1c] sm:$0xf]
        %v342 = vld [vmem:[%s3 + $0x20] sm:$0xf]
        %v343 = vld [vmem:[%s3 + $0x24] sm:$0xf]
        %v344 = vld [vmem:[%s3 + $0x28] sm:$0xf]
        %v345 = vld [vmem:[%s3 + $0x2c] sm:$0xf]
        %v346 = vld [vmem:[%s3 + $0x30] sm:$0xf]
        %v347 = vld [vmem:[%s3 + $0x34] sm:$0xf]
        %v348 = vld [vmem:[%s3 + $0x38] sm:$0xf]
        %v349 = vld [vmem:[%s3 + $0x3c] sm:$0xf]
        %v350 = vld [vmem:[%s4] sm:$0x1]
        %v352 = vlaneseq
        %v353 = vshrl.u32 %v352, 7
        %v354 = vsub.s32 0, %v353
        %v355 = vrot.slane %v350, %v354
        %v373 = vunpack.c.l.b16 %v334
        %v374 = vunpack.c.l.b16 %v335
        %v375 = vunpack.c.l.b16 %v336
        %v376 = vunpack.c.l.b16 %v337
        %v377 = vunpack.c.l.b16 %v338
        %v378 = vunpack.c.l.b16 %v339
        %v379 = vunpack.c.l.b16 %v340
        %v380 = vunpack.c.l.b16 %v341
        %v381 = vunpack.c.l.b16 %v342
        %v382 = vunpack.c.l.b16 %v343
        %v383 = vunpack.c.l.b16 %v344
        %v384 = vunpack.c.l.b16 %v345
        %v385 = vunpack.c.l.b16 %v346
        %v386 = vunpack.c.l.b16 %v347
        %v387 = vunpack.c.l.b16 %v348
        %v388 = vunpack.c.l.b16 %v349
        %v389 = vpack.c.b16 %v374, %v373
        %v390 = vpack.c.b16 %v376, %v375
        %v391 = vpack.c.b16 %v378, %v377
        %v392 = vpack.c.b16 %v380, %v379
        %v393 = vpack.c.b16 %v382, %v381
        %v394 = vpack.c.b16 %v384, %v383
        %v395 = vpack.c.b16 %v386, %v385
        %v396 = vpack.c.b16 %v388, %v387
        %405 = vmatprep.subr.bf16.mxu0 0
        %406 = vmatpush1.bf16.msra.mxu0 %v389
        %407 = vmatprep.subr.bf16.mxu0 0
        %408 = vmatpush1.bf16.msra.mxu0 %v390
        %409 = vmatprep.subr.bf16.mxu0 0
        %410 = vmatpush1.bf16.msra.mxu0 %v391
        %411 = vmatprep.subr.bf16.mxu0 0
        %412 = vmatpush1.bf16.msra.mxu0 %v392
        %413 = vmatprep.subr.bf16.mxu0 0
        %414 = vmatpush1.bf16.msra.mxu0 %v393
        %415 = vmatprep.subr.bf16.mxu0 0
        %416 = vmatpush1.bf16.msra.mxu0 %v394
        %417 = vmatprep.subr.bf16.mxu0 0
        %418 = vmatpush1.bf16.msra.mxu0 %v395
        %419 = vmatprep.subr.bf16.mxu0 0
        %420 = vmatpush1.bf16.msra.mxu0 %v396
        %421 = vmatprep.subr.bf16.mxu0 0
        %422 = vmatpush1.bf16.msra.mxu0 0
        %423 = vmatprep.subr.bf16.mxu0 0
        %424 = vmatpush1.bf16.msra.mxu0 0
        %425 = vmatprep.subr.bf16.mxu0 0
        %426 = vmatpush1.bf16.msra.mxu0 0
        %427 = vmatprep.subr.bf16.mxu0 0
        %428 = vmatpush1.bf16.msra.mxu0 0
        %429 = vmatprep.subr.bf16.mxu0 0
        %430 = vmatpush1.bf16.msra.mxu0 0
        %431 = vmatprep.subr.bf16.mxu0 0
        %432 = vmatpush1.bf16.msra.mxu0 0
        %433 = vmatprep.subr.bf16.mxu0 0
        %434 = vmatpush1.bf16.msra.mxu0 0
        %435 = vmatprep.subr.bf16.mxu0 0
        %436 = vmatpush1.bf16.msra.mxu0 0
        %437 = vmatprep.mubr.bf16.mxu0 0
        %438 = vmatmul.mubr.bf16.gmra.mrb[0].mxu0 %v332
        %v439 = vpop.f32.mrb[0].mxu0
        %v440 = vadd.f32 %v355, %v439
        %v441 = vpop.f32.mrb[0].mxu0
        %v442 = vpop.f32.mrb[0].mxu0
        %v443 = vadd.f32 %v355, %v442
        %v444 = vpop.f32.mrb[0].mxu0
        %445 = vmatprep.mubr.bf16.mxu0 0
        %446 = vmatmul.mubr.bf16.gmra.mrb[0].mxu0 %v333
        %v447 = vpop.f32.mrb[0].mxu0
        %v448 = vadd.f32 %v355, %v447
        %v449 = vpop.f32.mrb[0].mxu0
        %v450 = vpop.f32.mrb[0].mxu0
        %v451 = vadd.f32 %v355, %v450
        %v452 = vpop.f32.mrb[0].mxu0
        %453 = vdwg.mxu0
        %v454 = vmax.f32 %v440, 0.0
        %v455 = vmax.f32 %v443, 0.0
        %v456 = vmax.f32 %v448, 0.0
        %v457 = vmax.f32 %v451, 0.0
        %v458 = vadd.f32 %v454, %v301
        %v459 = vadd.f32 %v455, %v305
        %v460 = vadd.f32 %v456, %v311
        %v461 = vadd.f32 %v457, %v315
        %462 = vst [vmem:[%s218] sm:$0xff] %v458
        %463 = vst [vmem:[%s218 + $0x8] sm:$0xff] %v459
        %464 = vst [vmem:[%s218 + $0x10] sm:$0xff] %v460
        %465 = vst [vmem:[%s218 + $0x18] sm:$0xff] %v461
        %s466 = sand.u32 %s137, 1
        %s467 = scalar_lea.sflag [#allocation3], %s466
        %s468 = sand.u32 %s137, 1
        %s469 = smul.addr %s468, 32
        %s470 = scalar_lea.vmem [#allocation2], %s469
        // Predicated region
        $region41: #{tpu_custom_call.1} parent=39 // pred_check
          %p471 = pneg %p147
        $region42: #{tpu_custom_call.1} parent=39 // pred_check_branch
          %473 = sbr.rel (%p471) target = $region44
        $region43: #{tpu_custom_call.1} parent=39 // pred_region
          %s474 = smul.u32 4, %s19
          %s476 = ssub.s32 512, 512
          %477 = vsyncadd %s467, %s476
          %s478 = smul.addr %s474, 128
          %s479 = scalar_lea.hbm %s5, %s478
          %s480 = sshll.u32 %s470, 4
          %s481 = int_to_ptr.vmem [resolvable:$true] %s480
          %486 = dma.vmem_to_hbm [thread:$0]  %s481, 512, %s479, %s467, 128, 128, 8
        $region44: #{tpu_custom_call.1} parent=39 // pred_fallthru
          _
      $region40: #{tpu_custom_call.1} parent=5 // pred_fallthru
        _
      %p487 = scmp.le.s32.totalorder 2, %s14
      // Predicated region
      $region45: #{tpu_custom_call.1} parent=5 // pred_check
        %p488 = pneg %p487
      $region46: #{tpu_custom_call.1} parent=5 // pred_check_branch
        %490 = sbr.rel (%p488) target = $region48
      $region47: #{tpu_custom_call.1} parent=5 // pred_region
        %s491 = ssub.s32 %s14, 2
        // Predicated region
        $region49: #{tpu_custom_call.1} parent=47 // pred_check
          %p492 = pneg %p153
        $region50: #{tpu_custom_call.1} parent=47 // pred_check_branch
          %494 = sbr.rel (%p492) target = $region52
        $region51: #{tpu_custom_call.1} parent=47 // pred_region
          %s495 = sand.u32 %s138, 1
          %s496 = scalar_lea.sflag [#allocation3], %s495
          %s497 = sand.u32 %s138, 1
          %s498 = smul.addr %s497, 32
          %s499 = scalar_lea.vmem [#allocation2], %s498
          %500 = dma.done %s496, 512
        $region52: #{tpu_custom_call.1} parent=47 // pred_fallthru
          _
      $region48: #{tpu_custom_call.1} parent=5 // pred_fallthru
        _
    $region6: #{tpu_custom_call.1} parent=1 // loop_footer
      %s18 = sadd.s32 1, %s14
    $region7: #{tpu_custom_call.1} parent=1 // loop_footer_branch
      %13 = sbr.rel target = $region3
    $region8: #{tpu_custom_call.1} parent=1 // loop_exit
      _
    %501 = vsyncpa [#allocation3], 1
    %s502 = scalar_lea.sflag [#allocation3], 1
    %503 = vsyncpa %s502, 1

</llo_original>
